<compile_context>
chip_gen: v7x
topology: tpu7x:2x2x1
jax: 0.10.0
libtpu: 0.0.40
codegen_flags: <defaults>
</compile_context>

<pallas_src>
import math

import jax
import jax.numpy as jnp
from jax.experimental import pallas as pl
from jax.experimental.pallas import tpu as pltpu


def calc_same_pad(kernel_size: int, stride: int = 1, in_shape: int = 1, dilation: int = 1):
    """Replicates TF 'SAME' pad (left, right), as in the PyTorch module."""
    effective_k = (kernel_size - 1) * dilation + 1
    if stride == 1:
        total_pad = effective_k - 1
    else:
        out_len = math.ceil(in_shape / stride)
        total_pad = max((out_len - 1) * stride + effective_k - in_shape, 0)
    pad_left = total_pad // 2
    pad_right = total_pad - pad_left
    return (pad_left, pad_right)


def _make_pad_kernel(pad_left: int, pad_right: int, L: int):
    """Kernel over a (row_block, L) input tile -> (row_block, L_out) output tile."""

    def pad_kernel(x_ref, o_ref):
        rows = o_ref.shape[0]
        # Zero only the pad lanes (tiny masked stores), then store the data at its
        # offset with one sliced store. No concatenate, no full-slab materialization.
        if pad_left > 0:
            o_ref[:, pl.ds(0, pad_left)] = jnp.zeros((rows, pad_left), dtype=o_ref.dtype)
        o_ref[:, pl.ds(pad_left, L)] = x_ref[...]
        if pad_right > 0:
            o_ref[:, pl.ds(pad_left + L, pad_right)] = jnp.zeros(
                (rows, pad_right), dtype=o_ref.dtype
            )

    return pad_kernel


def _sublane_pack(dtype) -> int:
    # f32/i32 -> 8 rows per vreg, bf16/f16 -> 16, int8/fp8 -> 32.
    return max(8, 32 // jnp.dtype(dtype).itemsize)


def _choose_row_block(R: int, L: int, L_out: int, dtype,
                      tile_budget_bytes: int = 12 * 1024 * 1024) -> int:
    """Largest sublane-aligned row block whose (double-buffered) in+out tiles fit the budget."""
    pack = _sublane_pack(dtype)
    itemsize = jnp.dtype(dtype).itemsize
    per_row_bytes = 2 * (L + L_out) * itemsize  # in + out, each double-buffered
    max_rows = tile_budget_bytes // max(per_row_bytes, 1)
    max_rows = max(pack, (max_rows // pack) * pack)
    row_block = min(max_rows, 1024)
    if R <= row_block:
        return R  # a block equal to the full array dim is always layout-legal
    return row_block


def same_zero_pad_1d(x: jax.Array, kernel_size: int, stride: int = 1,
                     dilation: int = 1) -> jax.Array:
    """Pallas implementation of SameZeroPad1d.forward for NCL inputs."""
    N, C, L = x.shape
    pad_left, pad_right = calc_same_pad(kernel_size, stride, in_shape=L, dilation=dilation)
    if pad_left == 0 and pad_right == 0:
        return x
    L_out = L + pad_left + pad_right

    # Flatten batch*channel into one rows axis: full sublane utilization and a
    # 'parallel' grid with many steps (megacore load balancing on v7x).
    R = N * C
    x2 = x.reshape(R, L)

    row_block = _choose_row_block(R, L, L_out, x.dtype)
    grid = (pl.cdiv(R, row_block),)

    kernel = _make_pad_kernel(pad_left, pad_right, L)

    # TODO(synk): for very long L (a single (row_block, L)+(row_block, L_out) slab
    # exceeding the VMEM budget) tile the length axis with 128-lane output blocks;
    # in production, fuse this pad into the consumer Conv1d to avoid the extra
    # HBM read+write round trip entirely.
    out2 = pl.pallas_call(
        kernel,
        out_shape=jax.ShapeDtypeStruct((R, L_out), x.dtype),
        grid_spec=pltpu.PrefetchScalarGridSpec(
            num_scalar_prefetch=0,
            grid=grid,
            in_specs=[pl.BlockSpec((row_block, L), lambda i: (i, 0))],
            out_specs=pl.BlockSpec((row_block, L_out), lambda i: (i, 0)),
        ),
        compiler_params=pltpu.CompilerParams(
            dimension_semantics=("parallel",),
            vmem_limit_bytes=32 * 1024 * 1024,  # safe on v5e/v6e/v7x; tiles budgeted to 12 MiB
        ),
    )(x2)

    return out2.reshape(N, C, L_out)


if __name__ == "__main__":
    # Module config (deterministic, in-script): kernel_size=3, stride=1, dilation=1
    kernel_size, stride, dilation = 3, 1, 1

    key = jax.random.PRNGKey(0)
    N, C, L = 2, 4, 16
    x = jax.random.normal(key, (N, C, L), dtype=jnp.float32)

    out = same_zero_pad_1d(x, kernel_size, stride=stride, dilation=dilation)
    out = jax.block_until_ready(out)

    # Reference check against jnp.pad (same semantics as F.pad constant-0 on last dim)
    pad_l, pad_r = calc_same_pad(kernel_size, stride, in_shape=L, dilation=dilation)
    ref = jnp.pad(x, ((0, 0), (0, 0), (pad_l, pad_r)), mode="constant")
    assert out.shape == ref.shape, (out.shape, ref.shape)
    assert jnp.allclose(out, ref), "Pallas output mismatch vs reference"

    print("KERNEL_OK")
</pallas_src>

<mosaic_0001>
module attributes {stable_mosaic.version = 11 : i64} {
  func.func @pad_kernel(%arg0: i32, %arg1: memref<8x16xf32, #tpu.memory_space<vmem>>, %arg2: memref<8x18xf32, #tpu.memory_space<vmem>>) attributes {dimension_semantics = [#tpu.dimension_semantics<parallel>], iteration_bounds = array<i64: 1>, scalar_prefetch = 0 : i64, scratch_operands = 0 : i64, tpu.core_type = #tpu.core_type<tc>, window_params = [{transform_indices = @transform_0, window_bounds = array<i64: 8, 16>}, {transform_indices = @transform_1, window_bounds = array<i64: 8, 18>}]} {
    %cst = arith.constant 0.000000e+00 : f32
    %0 = vector.broadcast %cst : f32 to vector<8x1xf32>
    %c0 = arith.constant 0 : index
    %c0_0 = arith.constant 0 : index
    %1 = vector.load %arg2[%c0, %c0_0] : memref<8x18xf32, #tpu.memory_space<vmem>>, vector<8x1xf32>
    tpu.vector_store %arg2[%c0, %c0_0], %0 {strides = array<i32>} : memref<8x18xf32, #tpu.memory_space<vmem>>, vector<8x1xf32>,
    %c0_1 = arith.constant 0 : index
    %c0_2 = arith.constant 0 : index
    %2 = vector.load %arg1[%c0_1, %c0_2] : memref<8x16xf32, #tpu.memory_space<vmem>>, vector<8x16xf32>
    %c0_3 = arith.constant 0 : index
    %c1 = arith.constant 1 : index
    %3 = vector.load %arg2[%c0_3, %c1] : memref<8x18xf32, #tpu.memory_space<vmem>>, vector<8x16xf32>
    tpu.vector_store %arg2[%c0_3, %c1], %2 {strides = array<i32>} : memref<8x18xf32, #tpu.memory_space<vmem>>, vector<8x16xf32>,
    %cst_4 = arith.constant 0.000000e+00 : f32
    %4 = vector.broadcast %cst_4 : f32 to vector<8x1xf32>
    %c0_5 = arith.constant 0 : index
    %c17 = arith.constant 17 : index
    %5 = vector.load %arg2[%c0_5, %c17] : memref<8x18xf32, #tpu.memory_space<vmem>>, vector<8x1xf32>
    tpu.vector_store %arg2[%c0_5, %c17], %4 {strides = array<i32>} : memref<8x18xf32, #tpu.memory_space<vmem>>, vector<8x1xf32>,
    return
  }
  func.func @transform_0(%arg0: i32) -> (i32, i32) {
    %c0_i32 = arith.constant 0 : i32
    %c0_i32_0 = arith.constant 0 : i32
    return %arg0, %c0_i32 : i32, i32
  }
  func.func @transform_1(%arg0: i32) -> (i32, i32) {
    %c0_i32 = arith.constant 0 : i32
    %c0_i32_0 = arith.constant 0 : i32
    return %arg0, %c0_i32 : i32, i32
  }
}

</mosaic_0001>

<llo_original>
// kernel: tpu_custom_call.1
$region0: #{tpu_custom_call.1}
  #allocation0 [shape = 'u32[]', space=smem, size = 0x4, offset = 0x4, fixed_abs, tag = 'smem constant byte address 0x4 - core index']
  #allocation1 [shape = 'u32[144,128]{1,0:T(1,128)}', space=vmem, size = 0x12000, scoped, tag = 'internal scratch']
  %s0 = inlined_call_operand.hbm [shape: f32[8,16], index: 0, kind: input, shape index: {}]
  %s1 = inlined_call_operand.hbm [shape: f32[8,18], index: 1, kind: output, shape index: {}]
  %s2 = sld [smem:[#allocation0]]
  $region18: #{tpu_custom_call.1} parent=0
    _
  %s4 = ssub.s32 1, %s2
  %s5 = scalar_select 0, %s4, %s2
  $region1: #{tpu_custom_call.1} parent=0
    #allocation2 [shape = 'u8[4096]{0}', space=vmem, size = 0x1000, scoped, tag = 'input window, operand 0, single buffered']
    #allocation3 [shape = 's32[1]{0}', space=sflag, size = 0x4, scoped, tag = 'scoped memory for tpu_custom_call.1']
    #allocation4 [shape = 's32[1]{0}', space=sflag, size = 0x4, scoped, tag = 'scoped memory for tpu_custom_call.1']
    #allocation5 [shape = 'u8[4096]{0}', space=vmem, size = 0x1000, scoped, tag = 'output window, operand 0, single buffered']
    %6 = vsyncpa [#allocation3], 0
    %7 = vsyncpa [#allocation4], 0
    // Predicated region
    $region2: #{tpu_custom_call.1} parent=1 // pred_check
      _
    $region3: #{tpu_custom_call.1} parent=1 // pred_check_branch
      %9 = sbr.rel (0) target = $region5
    $region4: #{tpu_custom_call.1} parent=1 // pred_region
      %s11 = ssub.s32 128, 128
      %12 = vsyncadd [#allocation3], %s11
      %s14 = sshll.u32 [#allocation2], 4
      %s15 = int_to_ptr.vmem [resolvable:$true] %s14
      %17 = dma.hbm_to_vmem [thread:$0]  %s0, 128, %s15, [#allocation3]
    $region5: #{tpu_custom_call.1} parent=1 // pred_fallthru
      _
    // Predicated region
    $region6: #{tpu_custom_call.1} parent=1 // pred_check
      _
    $region7: #{tpu_custom_call.1} parent=1 // pred_check_branch
      %19 = sbr.rel (0) target = $region9
    $region8: #{tpu_custom_call.1} parent=1 // pred_region
      %20 = dma.done [#allocation3], 128
    $region9: #{tpu_custom_call.1} parent=1 // pred_fallthru
      _
    %vm21 = vcmask 7168
    %22 = vst.msk [vmem:[#allocation5] sm:$0xff] %vm21, 0.0
    %v23 = vld [vmem:[#allocation2] sm:$0xff]
    %25 = vrot.lane.b32.xlu0 %v23, 1
    %v26 = vpop.permute.xlu0 %25
    %vm28 = vcmask 138248
    %29 = vst.msk [vmem:[#allocation5] sm:$0xff] %vm28, %v26
    %vm30 = vcmask 146568
    %31 = vst.msk [vmem:[#allocation5] sm:$0xff] %vm30, 0.0
    // Predicated region
    $region10: #{tpu_custom_call.1} parent=1 // pred_check
      _
    $region11: #{tpu_custom_call.1} parent=1 // pred_check_branch
      %33 = sbr.rel (0) target = $region13
    $region12: #{tpu_custom_call.1} parent=1 // pred_region
      %s35 = ssub.s32 128, 128
      %36 = vsyncadd [#allocation4], %s35
      %s38 = sshll.u32 [#allocation5], 4
      %s39 = int_to_ptr.vmem [resolvable:$true] %s38
      %41 = dma.vmem_to_hbm [thread:$0]  %s39, 128, %s1, [#allocation4]
    $region13: #{tpu_custom_call.1} parent=1 // pred_fallthru
      _
    // Predicated region
    $region14: #{tpu_custom_call.1} parent=1 // pred_check
      _
    $region15: #{tpu_custom_call.1} parent=1 // pred_check_branch
      %43 = sbr.rel (0) target = $region17
    $region16: #{tpu_custom_call.1} parent=1 // pred_region
      %44 = dma.done [#allocation4], 128
    $region17: #{tpu_custom_call.1} parent=1 // pred_fallthru
      _
    %45 = vsyncpa [#allocation3], 1
    %46 = vsyncpa [#allocation4], 1

</llo_original>
